<compile_context>
chip_gen: v5e
topology: v5e:2x2
jax: 0.10.0
libtpu: 0.0.40
codegen_flags: <defaults>
</compile_context>

<pallas_src>
import math

import jax
import jax.numpy as jnp
from jax import lax
from jax.experimental import pallas as pl
from jax.experimental.pallas import tpu as pltpu

# ---- small, module-consistent config -------------------------------------
SEQ = 8            # seq_len
BATCH = 2          # batch_size
TOKEN_DIM = 32     # token_dim
NUM_HEADS = 4      # num_heads
HEAD_DIM = TOKEN_DIM // NUM_HEADS
HIDDEN_DIMS = (64, 32)
REASONING_DIM = 16
EPS = 1e-5         # nn.LayerNorm default eps
NROWS = BATCH * SEQ

# ---- packed-parameter layout ----------------------------------------------
LANES = 128                                    # lane-pad both packed buffers
# row offsets of each weight matrix inside the packed weight buffer (bf16)
R_WQKV, R_WO, R_W1, R_W2, R_W3, R_WP = 0, 32, 64, 96, 160, 192
W_ROWS = 224
# row index of each vector inside the packed vector buffer (f32)
V_BQKV, V_BO, V_G1, V_BE1, V_B1, V_B2, V_B3, V_G2, V_BE2, V_BP = range(10)
V_MASK = 16                                    # (16,16) block-diag batch mask
V_ROWS = 32


def _layer_norm(x, g, b):
    # two independent reductions -> var = E[x^2] - mu^2 (shorter serial chain)
    mu = jnp.mean(x, axis=-1, keepdims=True)
    ex2 = jnp.mean(x * x, axis=-1, keepdims=True)
    var = ex2 - mu * mu
    return (x - mu) * lax.rsqrt(var + EPS) * g + b


def token_reasoner_kernel(x_ref, w_ref, v_ref, out_ref):
    f32 = jnp.float32
    bf16 = jnp.bfloat16
    D = TOKEN_DIM
    H1, H2 = HIDDEN_DIMS

    # ---- packed parameter views (static slices of VMEM refs) ---------------
    wqkv = w_ref[R_WQKV:R_WQKV + D, 0:3 * D]          # (32, 96) bf16, Q cols pre-scaled
    w1 = w_ref[R_W1:R_W1 + D, 0:H1]                   # (32, 64)
    w2 = w_ref[R_W2:R_W2 + H1, 0:H2]                  # (64, 32)
    w3 = w_ref[R_W3:R_W3 + H2, 0:D]                   # (32, 32)
    wp = w_ref[R_WP:R_WP + D, 0:REASONING_DIM]        # (32, 16) pre-scaled by 1/SEQ

    bqkv = v_ref[V_BQKV:V_BQKV + 1, 0:3 * D]          # (1, 96)  f32 (Q part pre-scaled)
    bo = v_ref[V_BO:V_BO + 1, 0:D]
    g1 = v_ref[V_G1:V_G1 + 1, 0:D]
    be1 = v_ref[V_BE1:V_BE1 + 1, 0:D]
    b1 = v_ref[V_B1:V_B1 + 1, 0:H1]
    b2 = v_ref[V_B2:V_B2 + 1, 0:H2]
    b3 = v_ref[V_B3:V_B3 + 1, 0:D]
    g2 = v_ref[V_G2:V_G2 + 1, 0:D]
    be2 = v_ref[V_BE2:V_BE2 + 1, 0:D]
    bp = v_ref[V_BP:V_BP + 1, 0:REASONING_DIM]
    mask = v_ref[V_MASK:V_MASK + NROWS, 0:NROWS]      # (16, 16) 0 / -1e9

    x = x_ref[...]                                    # (B*S, D) f32, rows = (b, s)

    # ---- fused QKV in-projection over all batch*seq rows --------------------
    qkv = jnp.dot(x.astype(bf16), wqkv, preferred_element_type=f32) + bqkv  # (16, 96)
    qkv_b = qkv.astype(bf16)

    # ---- per-head attention on flat (B*S, .) rows, block-diag batch mask ----
    # head merge folded into the out-projection: attn = sum_h ctx_h @ Wo[h*8:(h+1)*8]
    attn = None
    for h in range(NUM_HEADS):
        lo = h * HEAD_DIM
        q_h = qkv_b[:, lo:lo + HEAD_DIM]                       # (16, 8) already scaled
        k_h = qkv_b[:, D + lo:D + lo + HEAD_DIM]               # (16, 8)
        v_h = qkv_b[:, 2 * D + lo:2 * D + lo + HEAD_DIM]       # (16, 8)
        s_h = lax.dot_general(q_h, k_h, (((1,), (1,)), ((), ())),
                              preferred_element_type=f32)      # (16, 16) = q @ k.T
        s_h = s_h + mask                                       # kill cross-batch keys
        s_h = s_h - jnp.max(s_h, axis=-1, keepdims=True)
        p_h = jnp.exp(s_h)
        p_h = p_h * pl.reciprocal(jnp.sum(p_h, axis=-1, keepdims=True), approx=True)
        ctx_h = jnp.dot(p_h.astype(bf16), v_h, preferred_element_type=f32)  # (16, 8)
        wo_h = w_ref[R_WO + lo:R_WO + lo + HEAD_DIM, 0:D]                   # (8, 32)
        part = jnp.dot(ctx_h.astype(bf16), wo_h, preferred_element_type=f32)
        attn = part if attn is None else attn + part
    attn = attn + bo                                           # (16, 32)

    # ---- residual + LayerNorm1 ----------------------------------------------
    h1 = _layer_norm(x + attn, g1, be1)

    # ---- MLP: Linear->ReLU->(Dropout=id)->Linear->ReLU->(Dropout=id)->Linear -
    m = jnp.maximum(jnp.dot(h1.astype(bf16), w1, preferred_element_type=f32) + b1, 0.0)
    m = jnp.maximum(jnp.dot(m.astype(bf16), w2, preferred_element_type=f32) + b2, 0.0)
    m = jnp.dot(m.astype(bf16), w3, preferred_element_type=f32) + b3

    # ---- residual + LayerNorm2 ----------------------------------------------
    h2 = _layer_norm(h1 + m, g2, be2)

    # ---- project-then-pool: projection at M=16, then per-batch sublane sum ---
    # (wp already carries the 1/SEQ factor; bias added once after pooling)
    h2p = jnp.dot(h2.astype(bf16), wp, preferred_element_type=f32)        # (16, 16)
    pooled = jnp.sum(h2p.reshape(BATCH, SEQ, REASONING_DIM), axis=1)      # (2, 16)
    out_ref[...] = pooled + bp


# ---- single-instance entry point (module forward semantics) -----------------
def token_reasoner(tokens, w_pack, v_pack):
    # Host-side layout change: (S, B, D) -> (B*S, D) so every per-batch slab is
    # a contiguous sublane block inside the kernel.
    x = jnp.transpose(tokens, (1, 0, 2)).reshape(NROWS, TOKEN_DIM)
    return pl.pallas_call(
        token_reasoner_kernel,
        out_shape=jax.ShapeDtypeStruct((BATCH, REASONING_DIM), jnp.float32),
        in_specs=[pl.BlockSpec(memory_space=pltpu.MemorySpace.VMEM)] * 3,
        out_specs=pl.BlockSpec(memory_space=pltpu.MemorySpace.VMEM),
    )(x, w_pack, v_pack)


# ---- multi-instance entry point: grid over instances, resident weights ------
def token_reasoner_batched(tokens_stacked, w_pack, v_pack):
    # tokens_stacked: (N, S, B, D) -> N independent TokenReasoner forwards.
    # Weights stay VMEM-resident (constant block index); x/out tiles pipeline;
    # the instance axis is "parallel" (dual-TC split on v7x, no-op on v5e/v6e).
    # Per-step buffers are ~2 KiB, far inside v7x's 32 MiB scoped-VMEM default.
    n = tokens_stacked.shape[0]
    x = jnp.transpose(tokens_stacked, (0, 2, 1, 3)).reshape(n, NROWS, TOKEN_DIM)
    return pl.pallas_call(
        token_reasoner_kernel,
        out_shape=jax.ShapeDtypeStruct((n, BATCH, REASONING_DIM), jnp.float32),
        grid=(n,),
        in_specs=[
            pl.BlockSpec((None, NROWS, TOKEN_DIM), lambda i: (i, 0, 0)),
            pl.BlockSpec((W_ROWS, LANES), lambda i: (0, 0)),
            pl.BlockSpec((V_ROWS, LANES), lambda i: (0, 0)),
        ],
        out_specs=pl.BlockSpec((None, BATCH, REASONING_DIM), lambda i: (i, 0, 0)),
        compiler_params=pltpu.CompilerParams(dimension_semantics=("parallel",)),
    )(x, w_pack, v_pack)
    # TODO(synk): for very large instance counts, pack several instances'
    # (2,16) outputs side-by-side into 128-wide lanes per grid step so the
    # epilogue issues unmasked lane-dense stores.


# ---- host-side packing of the 16 parameter tensors into 2 VMEM buffers ------
def pack_params(params):
    (wqkv, bqkv, wo, bo, g1, be1, w1, b1, w2, b2, w3, b3, g2, be2, wp, bp) = params

    # Fold 1/sqrt(HEAD_DIM) into the Q weight columns + Q bias, and 1/SEQ into
    # the projection weight (bias added once after the pooled sum in-kernel).
    scale = 1.0 / math.sqrt(HEAD_DIM)
    wqkv = wqkv.at[:, 0:TOKEN_DIM].multiply(scale)
    bqkv = bqkv.at[:, 0:TOKEN_DIM].multiply(scale)
    wp = wp / SEQ

    w_pack = jnp.zeros((W_ROWS, LANES), jnp.float32)
    for row, mat in ((R_WQKV, wqkv), (R_WO, wo), (R_W1, w1),
                     (R_W2, w2), (R_W3, w3), (R_WP, wp)):
        r, c = mat.shape
        w_pack = w_pack.at[row:row + r, 0:c].set(mat)
    w_pack = w_pack.astype(jnp.bfloat16)          # matmul operands are bf16

    v_pack = jnp.zeros((V_ROWS, LANES), jnp.float32)
    for row, vec in ((V_BQKV, bqkv), (V_BO, bo), (V_G1, g1), (V_BE1, be1),
                     (V_B1, b1), (V_B2, b2), (V_B3, b3),
                     (V_G2, g2), (V_BE2, be2), (V_BP, bp)):
        v = vec.reshape(-1)
        v_pack = v_pack.at[row, 0:v.shape[0]].set(v)

    # precomputed batch block-diagonal attention mask for the flat (B*S) rows:
    # 0 inside a batch's seq block, -1e9 across batches.
    rb = jnp.arange(NROWS) // SEQ
    mask = jnp.where(rb[:, None] == rb[None, :], 0.0, -1e9).astype(jnp.float32)
    v_pack = v_pack.at[V_MASK:V_MASK + NROWS, 0:NROWS].set(mask)
    return w_pack, v_pack


# ---- deterministic synthetic parameter init (PyTorch Linear-like) ----------
def _linear(key, fan_in, fan_out):
    kw, kb = jax.random.split(key)
    bound = 1.0 / math.sqrt(fan_in)
    w = jax.random.uniform(kw, (fan_in, fan_out), jnp.float32, -bound, bound)
    b = jax.random.uniform(kb, (1, fan_out), jnp.float32, -bound, bound)
    return w, b


# ---- pure-JAX f32 reference for correctness check ---------------------------
def reference(tokens, params):
    (wqkv, bqkv, wo, bo, g1, be1, w1, b1, w2, b2, w3, b3, g2, be2, wp, bp) = params
    S, B, D = tokens.shape
    qkv = tokens @ wqkv + bqkv[0]                                  # (S,B,3D)
    q, k, v = jnp.split(qkv, 3, axis=-1)

    def split_heads(t):
        return t.reshape(S, B, NUM_HEADS, HEAD_DIM).transpose(1, 2, 0, 3)

    qh, kh, vh = map(split_heads, (q, k, v))                       # (B,H,S,hd)
    s = jnp.einsum('bhqd,bhkd->bhqk', qh, kh) / math.sqrt(HEAD_DIM)
    p = jax.nn.softmax(s, axis=-1)
    ctx = jnp.einsum('bhqk,bhkd->bhqd', p, vh)
    ctx = ctx.transpose(2, 0, 1, 3).reshape(S, B, D)
    attn = ctx @ wo + bo[0]

    def ln(x, g, b):
        mu = x.mean(-1, keepdims=True)
        xc = x - mu
        var = (xc * xc).mean(-1, keepdims=True)
        return xc / jnp.sqrt(var + EPS) * g[0] + b[0]

    h1 = ln(tokens + attn, g1, be1)
    m = jax.nn.relu(h1 @ w1 + b1[0])
    m = jax.nn.relu(m @ w2 + b2[0])
    m = m @ w3 + b3[0]
    h2 = ln(h1 + m, g2, be2)
    pooled = h2.mean(axis=0)                                       # (B, D)
    return pooled @ wp + bp[0]                                     # (B, R)


if __name__ == "__main__":
    key = jax.random.PRNGKey(0)
    ks = jax.random.split(key, 8)

    tokens = jax.random.normal(ks[0], (SEQ, BATCH, TOKEN_DIM), jnp.float32)

    wqkv, bqkv = _linear(ks[1], TOKEN_DIM, 3 * TOKEN_DIM)   # MHA in_proj
    wo, bo = _linear(ks[2], TOKEN_DIM, TOKEN_DIM)           # MHA out_proj
    g1 = jnp.ones((1, TOKEN_DIM), jnp.float32)              # LayerNorm1
    be1 = jnp.zeros((1, TOKEN_DIM), jnp.float32)
    w1, b1 = _linear(ks[3], TOKEN_DIM, HIDDEN_DIMS[0])      # MLP layer 1
    w2, b2 = _linear(ks[4], HIDDEN_DIMS[0], HIDDEN_DIMS[1])  # MLP layer 2
    w3, b3 = _linear(ks[5], HIDDEN_DIMS[1], TOKEN_DIM)      # MLP final
    g2 = jnp.ones((1, TOKEN_DIM), jnp.float32)              # LayerNorm2
    be2 = jnp.zeros((1, TOKEN_DIM), jnp.float32)
    wp, bp = _linear(ks[6], TOKEN_DIM, REASONING_DIM)       # projection

    params = (wqkv, bqkv, wo, bo, g1, be1,
              w1, b1, w2, b2, w3, b3,
              g2, be2, wp, bp)
    w_pack, v_pack = pack_params(params)

    # --- single-instance path (matches the module forward exactly) ----------
    out = jax.block_until_ready(token_reasoner(tokens, w_pack, v_pack))
    ref = reference(tokens, params)
    assert out.shape == (BATCH, REASONING_DIM), out.shape
    # bf16 matmul operands (f32 accumulation) vs pure-f32 reference -> looser tol.
    assert jnp.allclose(out, ref, rtol=3e-2, atol=3e-2), (out, ref)

    # --- multi-instance path: grid over instances, weights VMEM-resident ----
    N_INST = 4
    tokens_stack = jax.random.normal(ks[7], (N_INST, SEQ, BATCH, TOKEN_DIM),
                                     jnp.float32)
    out_b = jax.block_until_ready(
        token_reasoner_batched(tokens_stack, w_pack, v_pack))
    ref_b = jnp.stack([reference(tokens_stack[i], params) for i in range(N_INST)])
    assert out_b.shape == (N_INST, BATCH, REASONING_DIM), out_b.shape
    assert jnp.allclose(out_b, ref_b, rtol=3e-2, atol=3e-2), (out_b, ref_b)

    print("KERNEL_OK")
</pallas_src>

<mosaic_0001>
module attributes {stable_mosaic.version = 11 : i64} {
  func.func @token_reasoner_kernel(%arg0: memref<16x32xf32, #tpu.memory_space<vmem>>, %arg1: memref<224x128xbf16, #tpu.memory_space<vmem>>, %arg2: memref<32x128xf32, #tpu.memory_space<vmem>>, %arg3: memref<2x16xf32, #tpu.memory_space<vmem>>) attributes {dimension_semantics = [], scalar_prefetch = 0 : i64, scratch_operands = 0 : i64, tpu.core_type = #tpu.core_type<tc>} {
    %c0 = arith.constant 0 : index
    %c0_0 = arith.constant 0 : index
    %0 = vector.load %arg1[%c0, %c0_0] : memref<224x128xbf16, #tpu.memory_space<vmem>>, vector<32x96xbf16>
    %c64 = arith.constant 64 : index
    %c0_1 = arith.constant 0 : index
    %1 = vector.load %arg1[%c64, %c0_1] : memref<224x128xbf16, #tpu.memory_space<vmem>>, vector<32x64xbf16>
    %c96 = arith.constant 96 : index
    %c0_2 = arith.constant 0 : index
    %2 = vector.load %arg1[%c96, %c0_2] : memref<224x128xbf16, #tpu.memory_space<vmem>>, vector<64x32xbf16>
    %c160 = arith.constant 160 : index
    %c0_3 = arith.constant 0 : index
    %3 = vector.load %arg1[%c160, %c0_3] : memref<224x128xbf16, #tpu.memory_space<vmem>>, vector<32x32xbf16>
    %c192 = arith.constant 192 : index
    %c0_4 = arith.constant 0 : index
    %4 = vector.load %arg1[%c192, %c0_4] : memref<224x128xbf16, #tpu.memory_space<vmem>>, vector<32x16xbf16>
    %c0_5 = arith.constant 0 : index
    %c0_6 = arith.constant 0 : index
    %5 = vector.load %arg2[%c0_5, %c0_6] : memref<32x128xf32, #tpu.memory_space<vmem>>, vector<1x96xf32>
    %c1 = arith.constant 1 : index
    %c0_7 = arith.constant 0 : index
    %6 = vector.load %arg2[%c1, %c0_7] : memref<32x128xf32, #tpu.memory_space<vmem>>, vector<1x32xf32>
    %c2 = arith.constant 2 : index
    %c0_8 = arith.constant 0 : index
    %7 = vector.load %arg2[%c2, %c0_8] : memref<32x128xf32, #tpu.memory_space<vmem>>, vector<1x32xf32>
    %c3 = arith.constant 3 : index
    %c0_9 = arith.constant 0 : index
    %8 = vector.load %arg2[%c3, %c0_9] : memref<32x128xf32, #tpu.memory_space<vmem>>, vector<1x32xf32>
    %c4 = arith.constant 4 : index
    %c0_10 = arith.constant 0 : index
    %9 = vector.load %arg2[%c4, %c0_10] : memref<32x128xf32, #tpu.memory_space<vmem>>, vector<1x64xf32>
    %c5 = arith.constant 5 : index
    %c0_11 = arith.constant 0 : index
    %10 = vector.load %arg2[%c5, %c0_11] : memref<32x128xf32, #tpu.memory_space<vmem>>, vector<1x32xf32>
    %c6 = arith.constant 6 : index
    %c0_12 = arith.constant 0 : index
    %11 = vector.load %arg2[%c6, %c0_12] : memref<32x128xf32, #tpu.memory_space<vmem>>, vector<1x32xf32>
    %c7 = arith.constant 7 : index
    %c0_13 = arith.constant 0 : index
    %12 = vector.load %arg2[%c7, %c0_13] : memref<32x128xf32, #tpu.memory_space<vmem>>, vector<1x32xf32>
    %c8 = arith.constant 8 : index
    %c0_14 = arith.constant 0 : index
    %13 = vector.load %arg2[%c8, %c0_14] : memref<32x128xf32, #tpu.memory_space<vmem>>, vector<1x32xf32>
    %c9 = arith.constant 9 : index
    %c0_15 = arith.constant 0 : index
    %14 = vector.load %arg2[%c9, %c0_15] : memref<32x128xf32, #tpu.memory_space<vmem>>, vector<1x16xf32>
    %c16 = arith.constant 16 : index
    %c0_16 = arith.constant 0 : index
    %15 = vector.load %arg2[%c16, %c0_16] : memref<32x128xf32, #tpu.memory_space<vmem>>, vector<16x16xf32>
    %c0_17 = arith.constant 0 : index
    %c0_18 = arith.constant 0 : index
    %16 = vector.load %arg0[%c0_17, %c0_18] : memref<16x32xf32, #tpu.memory_space<vmem>>, vector<16x32xf32>
    %17 = arith.truncf %16 : vector<16x32xf32> to vector<16x32xbf16>
    %cst = arith.constant dense<0.000000e+00> : vector<16x96xf32>
    %18 = tpu.matmul %17, %0, %cst {dimension_numbers = #tpu.dot_dimension_numbers<[1], [0], [0], [1], [0, 0, 1, 1], [], []>} : vector<16x32xbf16>, vector<32x96xbf16>, vector<16x96xf32> -> vector<16x96xf32>
    %19 = vector.broadcast %5 : vector<1x96xf32> to vector<16x96xf32>
    %20 = arith.addf %18, %19 : vector<16x96xf32>
    %21 = arith.truncf %20 : vector<16x96xf32> to vector<16x96xbf16>
    %22 = vector.extract_strided_slice %21 {offsets = [0, 0], sizes = [16, 8], strides = [1, 1]} : vector<16x96xbf16> to vector<16x8xbf16>
    %23 = vector.extract_strided_slice %21 {offsets = [0, 32], sizes = [16, 8], strides = [1, 1]} : vector<16x96xbf16> to vector<16x8xbf16>
    %24 = vector.extract_strided_slice %21 {offsets = [0, 64], sizes = [16, 8], strides = [1, 1]} : vector<16x96xbf16> to vector<16x8xbf16>
    %cst_19 = arith.constant dense<0.000000e+00> : vector<16x16xf32>
    %25 = tpu.matmul %22, %23, %cst_19 {dimension_numbers = #tpu.dot_dimension_numbers<[1], [1], [0], [0], [0, 0, 1, 0], [], []>} : vector<16x8xbf16>, vector<16x8xbf16>, vector<16x16xf32> -> vector<16x16xf32>
    %26 = arith.addf %25, %15 : vector<16x16xf32>
    %cst_20 = arith.constant dense<0xFF800000> : vector<16xf32>
    %27 = vector.multi_reduction <maximumf>, %26, %cst_20 [1] : vector<16x16xf32> to vector<16xf32>
    %28 = vector.shape_cast %27 : vector<16xf32> to vector<16x1xf32>
    %29 = vector.broadcast %28 : vector<16x1xf32> to vector<16x16xf32>
    %30 = arith.subf %26, %29 : vector<16x16xf32>
    %31 = math.exp %30 : vector<16x16xf32>
    %cst_21 = arith.constant dense<0.000000e+00> : vector<16xf32>
    %32 = vector.multi_reduction <add>, %31, %cst_21 [1] : vector<16x16xf32> to vector<16xf32>
    %33 = vector.shape_cast %32 : vector<16xf32> to vector<16x1xf32>
    %34 = tpu.reciprocal %33 {approx = true} : vector<16x1xf32> -> vector<16x1xf32>
    %35 = vector.broadcast %34 : vector<16x1xf32> to vector<16x16xf32>
    %36 = arith.mulf %31, %35 : vector<16x16xf32>
    %37 = arith.truncf %36 : vector<16x16xf32> to vector<16x16xbf16>
    %cst_22 = arith.constant dense<0.000000e+00> : vector<16x8xf32>
    %38 = tpu.matmul %37, %24, %cst_22 {dimension_numbers = #tpu.dot_dimension_numbers<[1], [0], [0], [1], [0, 0, 1, 1], [], []>} : vector<16x16xbf16>, vector<16x8xbf16>, vector<16x8xf32> -> vector<16x8xf32>
    %c32 = arith.constant 32 : index
    %c0_23 = arith.constant 0 : index
    %39 = vector.load %arg1[%c32, %c0_23] : memref<224x128xbf16, #tpu.memory_space<vmem>>, vector<8x32xbf16>
    %40 = arith.truncf %38 : vector<16x8xf32> to vector<16x8xbf16>
    %cst_24 = arith.constant dense<0.000000e+00> : vector<16x32xf32>
    %41 = tpu.matmul %40, %39, %cst_24 {dimension_numbers = #tpu.dot_dimension_numbers<[1], [0], [0], [1], [0, 0, 1, 1], [], []>} : vector<16x8xbf16>, vector<8x32xbf16>, vector<16x32xf32> -> vector<16x32xf32>
    %42 = vector.extract_strided_slice %21 {offsets = [0, 8], sizes = [16, 8], strides = [1, 1]} : vector<16x96xbf16> to vector<16x8xbf16>
    %43 = vector.extract_strided_slice %21 {offsets = [0, 40], sizes = [16, 8], strides = [1, 1]} : vector<16x96xbf16> to vector<16x8xbf16>
    %44 = vector.extract_strided_slice %21 {offsets = [0, 72], sizes = [16, 8], strides = [1, 1]} : vector<16x96xbf16> to vector<16x8xbf16>
    %cst_25 = arith.constant dense<0.000000e+00> : vector<16x16xf32>
    %45 = tpu.matmul %42, %43, %cst_25 {dimension_numbers = #tpu.dot_dimension_numbers<[1], [1], [0], [0], [0, 0, 1, 0], [], []>} : vector<16x8xbf16>, vector<16x8xbf16>, vector<16x16xf32> -> vector<16x16xf32>
    %46 = arith.addf %45, %15 : vector<16x16xf32>
    %cst_26 = arith.constant dense<0xFF800000> : vector<16xf32>
    %47 = vector.multi_reduction <maximumf>, %46, %cst_26 [1] : vector<16x16xf32> to vector<16xf32>
    %48 = vector.shape_cast %47 : vector<16xf32> to vector<16x1xf32>
    %49 = vector.broadcast %48 : vector<16x1xf32> to vector<16x16xf32>
    %50 = arith.subf %46, %49 : vector<16x16xf32>
    %51 = math.exp %50 : vector<16x16xf32>
    %cst_27 = arith.constant dense<0.000000e+00> : vector<16xf32>
    %52 = vector.multi_reduction <add>, %51, %cst_27 [1] : vector<16x16xf32> to vector<16xf32>
    %53 = vector.shape_cast %52 : vector<16xf32> to vector<16x1xf32>
    %54 = tpu.reciprocal %53 {approx = true} : vector<16x1xf32> -> vector<16x1xf32>
    %55 = vector.broadcast %54 : vector<16x1xf32> to vector<16x16xf32>
    %56 = arith.mulf %51, %55 : vector<16x16xf32>
    %57 = arith.truncf %56 : vector<16x16xf32> to vector<16x16xbf16>
    %cst_28 = arith.constant dense<0.000000e+00> : vector<16x8xf32>
    %58 = tpu.matmul %57, %44, %cst_28 {dimension_numbers = #tpu.dot_dimension_numbers<[1], [0], [0], [1], [0, 0, 1, 1], [], []>} : vector<16x16xbf16>, vector<16x8xbf16>, vector<16x8xf32> -> vector<16x8xf32>
    %c40 = arith.constant 40 : index
    %c0_29 = arith.constant 0 : index
    %59 = vector.load %arg1[%c40, %c0_29] : memref<224x128xbf16, #tpu.memory_space<vmem>>, vector<8x32xbf16>
    %60 = arith.truncf %58 : vector<16x8xf32> to vector<16x8xbf16>
    %cst_30 = arith.constant dense<0.000000e+00> : vector<16x32xf32>
    %61 = tpu.matmul %60, %59, %cst_30 {dimension_numbers = #tpu.dot_dimension_numbers<[1], [0], [0], [1], [0, 0, 1, 1], [], []>} : vector<16x8xbf16>, vector<8x32xbf16>, vector<16x32xf32> -> vector<16x32xf32>
    %62 = arith.addf %41, %61 : vector<16x32xf32>
    %63 = vector.extract_strided_slice %21 {offsets = [0, 16], sizes = [16, 8], strides = [1, 1]} : vector<16x96xbf16> to vector<16x8xbf16>
    %64 = vector.extract_strided_slice %21 {offsets = [0, 48], sizes = [16, 8], strides = [1, 1]} : vector<16x96xbf16> to vector<16x8xbf16>
    %65 = vector.extract_strided_slice %21 {offsets = [0, 80], sizes = [16, 8], strides = [1, 1]} : vector<16x96xbf16> to vector<16x8xbf16>
    %cst_31 = arith.constant dense<0.000000e+00> : vector<16x16xf32>
    %66 = tpu.matmul %63, %64, %cst_31 {dimension_numbers = #tpu.dot_dimension_numbers<[1], [1], [0], [0], [0, 0, 1, 0], [], []>} : vector<16x8xbf16>, vector<16x8xbf16>, vector<16x16xf32> -> vector<16x16xf32>
    %67 = arith.addf %66, %15 : vector<16x16xf32>
    %cst_32 = arith.constant dense<0xFF800000> : vector<16xf32>
    %68 = vector.multi_reduction <maximumf>, %67, %cst_32 [1] : vector<16x16xf32> to vector<16xf32>
    %69 = vector.shape_cast %68 : vector<16xf32> to vector<16x1xf32>
    %70 = vector.broadcast %69 : vector<16x1xf32> to vector<16x16xf32>
    %71 = arith.subf %67, %70 : vector<16x16xf32>
    %72 = math.exp %71 : vector<16x16xf32>
    %cst_33 = arith.constant dense<0.000000e+00> : vector<16xf32>
    %73 = vector.multi_reduction <add>, %72, %cst_33 [1] : vector<16x16xf32> to vector<16xf32>
    %74 = vector.shape_cast %73 : vector<16xf32> to vector<16x1xf32>
    %75 = tpu.reciprocal %74 {approx = true} : vector<16x1xf32> -> vector<16x1xf32>
    %76 = vector.broadcast %75 : vector<16x1xf32> to vector<16x16xf32>
    %77 = arith.mulf %72, %76 : vector<16x16xf32>
    %78 = arith.truncf %77 : vector<16x16xf32> to vector<16x16xbf16>
    %cst_34 = arith.constant dense<0.000000e+00> : vector<16x8xf32>
    %79 = tpu.matmul %78, %65, %cst_34 {dimension_numbers = #tpu.dot_dimension_numbers<[1], [0], [0], [1], [0, 0, 1, 1], [], []>} : vector<16x16xbf16>, vector<16x8xbf16>, vector<16x8xf32> -> vector<16x8xf32>
    %c48 = arith.constant 48 : index
    %c0_35 = arith.constant 0 : index
    %80 = vector.load %arg1[%c48, %c0_35] : memref<224x128xbf16, #tpu.memory_space<vmem>>, vector<8x32xbf16>
    %81 = arith.truncf %79 : vector<16x8xf32> to vector<16x8xbf16>
    %cst_36 = arith.constant dense<0.000000e+00> : vector<16x32xf32>
    %82 = tpu.matmul %81, %80, %cst_36 {dimension_numbers = #tpu.dot_dimension_numbers<[1], [0], [0], [1], [0, 0, 1, 1], [], []>} : vector<16x8xbf16>, vector<8x32xbf16>, vector<16x32xf32> -> vector<16x32xf32>
    %83 = arith.addf %62, %82 : vector<16x32xf32>
    %84 = vector.extract_strided_slice %21 {offsets = [0, 24], sizes = [16, 8], strides = [1, 1]} : vector<16x96xbf16> to vector<16x8xbf16>
    %85 = vector.extract_strided_slice %21 {offsets = [0, 56], sizes = [16, 8], strides = [1, 1]} : vector<16x96xbf16> to vector<16x8xbf16>
    %86 = vector.extract_strided_slice %21 {offsets = [0, 88], sizes = [16, 8], strides = [1, 1]} : vector<16x96xbf16> to vector<16x8xbf16>
    %cst_37 = arith.constant dense<0.000000e+00> : vector<16x16xf32>
    %87 = tpu.matmul %84, %85, %cst_37 {dimension_numbers = #tpu.dot_dimension_numbers<[1], [1], [0], [0], [0, 0, 1, 0], [], []>} : vector<16x8xbf16>, vector<16x8xbf16>, vector<16x16xf32> -> vector<16x16xf32>
    %88 = arith.addf %87, %15 : vector<16x16xf32>
    %cst_38 = arith.constant dense<0xFF800000> : vector<16xf32>
    %89 = vector.multi_reduction <maximumf>, %88, %cst_38 [1] : vector<16x16xf32> to vector<16xf32>
    %90 = vector.shape_cast %89 : vector<16xf32> to vector<16x1xf32>
    %91 = vector.broadcast %90 : vector<16x1xf32> to vector<16x16xf32>
    %92 = arith.subf %88, %91 : vector<16x16xf32>
    %93 = math.exp %92 : vector<16x16xf32>
    %cst_39 = arith.constant dense<0.000000e+00> : vector<16xf32>
    %94 = vector.multi_reduction <add>, %93, %cst_39 [1] : vector<16x16xf32> to vector<16xf32>
    %95 = vector.shape_cast %94 : vector<16xf32> to vector<16x1xf32>
    %96 = tpu.reciprocal %95 {approx = true} : vector<16x1xf32> -> vector<16x1xf32>
    %97 = vector.broadcast %96 : vector<16x1xf32> to vector<16x16xf32>
    %98 = arith.mulf %93, %97 : vector<16x16xf32>
    %99 = arith.truncf %98 : vector<16x16xf32> to vector<16x16xbf16>
    %cst_40 = arith.constant dense<0.000000e+00> : vector<16x8xf32>
    %100 = tpu.matmul %99, %86, %cst_40 {dimension_numbers = #tpu.dot_dimension_numbers<[1], [0], [0], [1], [0, 0, 1, 1], [], []>} : vector<16x16xbf16>, vector<16x8xbf16>, vector<16x8xf32> -> vector<16x8xf32>
    %c56 = arith.constant 56 : index
    %c0_41 = arith.constant 0 : index
    %101 = vector.load %arg1[%c56, %c0_41] : memref<224x128xbf16, #tpu.memory_space<vmem>>, vector<8x32xbf16>
    %102 = arith.truncf %100 : vector<16x8xf32> to vector<16x8xbf16>
    %cst_42 = arith.constant dense<0.000000e+00> : vector<16x32xf32>
    %103 = tpu.matmul %102, %101, %cst_42 {dimension_numbers = #tpu.dot_dimension_numbers<[1], [0], [0], [1], [0, 0, 1, 1], [], []>} : vector<16x8xbf16>, vector<8x32xbf16>, vector<16x32xf32> -> vector<16x32xf32>
    %104 = arith.addf %83, %103 : vector<16x32xf32>
    %105 = vector.broadcast %6 : vector<1x32xf32> to vector<16x32xf32>
    %106 = arith.addf %104, %105 : vector<16x32xf32>
    %107 = arith.addf %16, %106 : vector<16x32xf32>
    %cst_43 = arith.constant dense<0.000000e+00> : vector<16xf32>
    %108 = vector.multi_reduction <add>, %107, %cst_43 [1] : vector<16x32xf32> to vector<16xf32>
    %109 = vector.shape_cast %108 : vector<16xf32> to vector<16x1xf32>
    %cst_44 = arith.constant 3.200000e+01 : f32
    %110 = vector.broadcast %cst_44 : f32 to vector<16x1xf32>
    %111 = arith.divf %109, %110 : vector<16x1xf32>
    %112 = arith.mulf %107, %107 : vector<16x32xf32>
    %cst_45 = arith.constant dense<0.000000e+00> : vector<16xf32>
    %113 = vector.multi_reduction <add>, %112, %cst_45 [1] : vector<16x32xf32> to vector<16xf32>
    %114 = vector.shape_cast %113 : vector<16xf32> to vector<16x1xf32>
    %cst_46 = arith.constant 3.200000e+01 : f32
    %115 = vector.broadcast %cst_46 : f32 to vector<16x1xf32>
    %116 = arith.divf %114, %115 : vector<16x1xf32>
    %117 = arith.mulf %111, %111 : vector<16x1xf32>
    %118 = arith.subf %116, %117 : vector<16x1xf32>
    %119 = vector.broadcast %111 : vector<16x1xf32> to vector<16x32xf32>
    %120 = arith.subf %107, %119 : vector<16x32xf32>
    %cst_47 = arith.constant 9.99999974E-6 : f32
    %121 = vector.broadcast %cst_47 : f32 to vector<16x1xf32>
    %122 = arith.addf %118, %121 : vector<16x1xf32>
    %123 = math.rsqrt %122 : vector<16x1xf32>
    %124 = vector.broadcast %123 : vector<16x1xf32> to vector<16x32xf32>
    %125 = arith.mulf %120, %124 : vector<16x32xf32>
    %126 = vector.broadcast %7 : vector<1x32xf32> to vector<16x32xf32>
    %127 = arith.mulf %125, %126 : vector<16x32xf32>
    %128 = vector.broadcast %8 : vector<1x32xf32> to vector<16x32xf32>
    %129 = arith.addf %127, %128 : vector<16x32xf32>
    %130 = arith.truncf %129 : vector<16x32xf32> to vector<16x32xbf16>
    %cst_48 = arith.constant dense<0.000000e+00> : vector<16x64xf32>
    %131 = tpu.matmul %130, %1, %cst_48 {dimension_numbers = #tpu.dot_dimension_numbers<[1], [0], [0], [1], [0, 0, 1, 1], [], []>} : vector<16x32xbf16>, vector<32x64xbf16>, vector<16x64xf32> -> vector<16x64xf32>
    %132 = vector.broadcast %9 : vector<1x64xf32> to vector<16x64xf32>
    %133 = arith.addf %131, %132 : vector<16x64xf32>
    %cst_49 = arith.constant 0.000000e+00 : f32
    %134 = vector.broadcast %cst_49 : f32 to vector<16x64xf32>
    %135 = arith.maximumf %133, %134 : vector<16x64xf32>
    %136 = arith.truncf %135 : vector<16x64xf32> to vector<16x64xbf16>
    %cst_50 = arith.constant dense<0.000000e+00> : vector<16x32xf32>
    %137 = tpu.matmul %136, %2, %cst_50 {dimension_numbers = #tpu.dot_dimension_numbers<[1], [0], [0], [1], [0, 0, 1, 1], [], []>} : vector<16x64xbf16>, vector<64x32xbf16>, vector<16x32xf32> -> vector<16x32xf32>
    %138 = vector.broadcast %10 : vector<1x32xf32> to vector<16x32xf32>
    %139 = arith.addf %137, %138 : vector<16x32xf32>
    %cst_51 = arith.constant 0.000000e+00 : f32
    %140 = vector.broadcast %cst_51 : f32 to vector<16x32xf32>
    %141 = arith.maximumf %139, %140 : vector<16x32xf32>
    %142 = arith.truncf %141 : vector<16x32xf32> to vector<16x32xbf16>
    %cst_52 = arith.constant dense<0.000000e+00> : vector<16x32xf32>
    %143 = tpu.matmul %142, %3, %cst_52 {dimension_numbers = #tpu.dot_dimension_numbers<[1], [0], [0], [1], [0, 0, 1, 1], [], []>} : vector<16x32xbf16>, vector<32x32xbf16>, vector<16x32xf32> -> vector<16x32xf32>
    %144 = vector.broadcast %11 : vector<1x32xf32> to vector<16x32xf32>
    %145 = arith.addf %143, %144 : vector<16x32xf32>
    %146 = arith.addf %129, %145 : vector<16x32xf32>
    %cst_53 = arith.constant dense<0.000000e+00> : vector<16xf32>
    %147 = vector.multi_reduction <add>, %146, %cst_53 [1] : vector<16x32xf32> to vector<16xf32>
    %148 = vector.shape_cast %147 : vector<16xf32> to vector<16x1xf32>
    %cst_54 = arith.constant 3.200000e+01 : f32
    %149 = vector.broadcast %cst_54 : f32 to vector<16x1xf32>
    %150 = arith.divf %148, %149 : vector<16x1xf32>
    %151 = arith.mulf %146, %146 : vector<16x32xf32>
    %cst_55 = arith.constant dense<0.000000e+00> : vector<16xf32>
    %152 = vector.multi_reduction <add>, %151, %cst_55 [1] : vector<16x32xf32> to vector<16xf32>
    %153 = vector.shape_cast %152 : vector<16xf32> to vector<16x1xf32>
    %cst_56 = arith.constant 3.200000e+01 : f32
    %154 = vector.broadcast %cst_56 : f32 to vector<16x1xf32>
    %155 = arith.divf %153, %154 : vector<16x1xf32>
    %156 = arith.mulf %150, %150 : vector<16x1xf32>
    %157 = arith.subf %155, %156 : vector<16x1xf32>
    %158 = vector.broadcast %150 : vector<16x1xf32> to vector<16x32xf32>
    %159 = arith.subf %146, %158 : vector<16x32xf32>
    %cst_57 = arith.constant 9.99999974E-6 : f32
    %160 = vector.broadcast %cst_57 : f32 to vector<16x1xf32>
    %161 = arith.addf %157, %160 : vector<16x1xf32>
    %162 = math.rsqrt %161 : vector<16x1xf32>
    %163 = vector.broadcast %162 : vector<16x1xf32> to vector<16x32xf32>
    %164 = arith.mulf %159, %163 : vector<16x32xf32>
    %165 = vector.broadcast %12 : vector<1x32xf32> to vector<16x32xf32>
    %166 = arith.mulf %164, %165 : vector<16x32xf32>
    %167 = vector.broadcast %13 : vector<1x32xf32> to vector<16x32xf32>
    %168 = arith.addf %166, %167 : vector<16x32xf32>
    %169 = arith.truncf %168 : vector<16x32xf32> to vector<16x32xbf16>
    %cst_58 = arith.constant dense<0.000000e+00> : vector<16x16xf32>
    %170 = tpu.matmul %169, %4, %cst_58 {dimension_numbers = #tpu.dot_dimension_numbers<[1], [0], [0], [1], [0, 0, 1, 1], [], []>} : vector<16x32xbf16>, vector<32x16xbf16>, vector<16x16xf32> -> vector<16x16xf32>
    %171 = vector.shape_cast %170 : vector<16x16xf32> to vector<2x8x16xf32>
    %cst_59 = arith.constant dense<0.000000e+00> : vector<2x16xf32>
    %172 = vector.multi_reduction <add>, %171, %cst_59 [1] : vector<2x8x16xf32> to vector<2x16xf32>
    %173 = vector.broadcast %14 : vector<1x16xf32> to vector<2x16xf32>
    %174 = arith.addf %172, %173 : vector<2x16xf32>
    %c0_60 = arith.constant 0 : index
    %c0_61 = arith.constant 0 : index
    %175 = vector.load %arg3[%c0_60, %c0_61] : memref<2x16xf32, #tpu.memory_space<vmem>>, vector<2x16xf32>
    tpu.vector_store %arg3[%c0_60, %c0_61], %174 {strides = array<i32>} : memref<2x16xf32, #tpu.memory_space<vmem>>, vector<2x16xf32>,
    return
  }
}

</mosaic_0001>

<llo_original>
// kernel: tpu_custom_call.1
$region0: #{tpu_custom_call.1}
  #allocation0 [shape = 'u32[]', space=smem, size = 0x4, offset = 0x4, fixed_abs, tag = 'smem constant byte address 0x4 - core index']
  #allocation1 [shape = 'u32[72,128]{1,0:T(1,128)}', space=vmem, size = 0x9000, scoped, tag = 'internal scratch']
  %s0 = inlined_call_operand.hbm [shape: f32[16,32], index: 0, kind: input, shape index: {}]
  %s1 = inlined_call_operand.hbm [shape: bf16[224,128], index: 1, kind: input, shape index: {}]
  %s2 = inlined_call_operand.hbm [shape: f32[32,128], index: 2, kind: input, shape index: {}]
  %s3 = inlined_call_operand.hbm [shape: f32[2,16], index: 3, kind: output, shape index: {}]
  %s4 = sld [smem:[#allocation0]]
  $region34: #{tpu_custom_call.1} parent=0
    _
  %s6 = ssub.s32 1, %s4
  %s7 = scalar_select 0, %s6, %s4
  $region1: #{tpu_custom_call.1} parent=0
    #allocation2 [shape = 'u8[8192]{0}', space=vmem, size = 0x2000, scoped, tag = 'input window, operand 0, single buffered']
    #allocation3 [shape = 's32[1]{0}', space=sflag, size = 0x4, scoped, tag = 'scoped memory for tpu_custom_call.1']
    #allocation4 [shape = 's32[1]{0}', space=sflag, size = 0x4, scoped, tag = 'scoped memory for tpu_custom_call.1']
    #allocation5 [shape = 'u8[57344]{0}', space=vmem, size = 0xe000, scoped, tag = 'input window, operand 1, single buffered']
    #allocation6 [shape = 's32[1]{0}', space=sflag, size = 0x4, scoped, tag = 'scoped memory for tpu_custom_call.1']
    #allocation7 [shape = 'u8[16384]{0}', space=vmem, size = 0x4000, scoped, tag = 'input window, operand 2, single buffered']
    #allocation8 [shape = 'u8[1024]{0}', space=vmem, size = 0x400, scoped, tag = 'output window, operand 0, single buffered']
    %8 = vsyncpa [#allocation3], 0
    %9 = vsyncpa [#allocation6], 0
    %10 = vsyncpa [#allocation4], 0
    // Predicated region
    $region2: #{tpu_custom_call.1} parent=1 // pred_check
      _
    $region3: #{tpu_custom_call.1} parent=1 // pred_check_branch
      %12 = sbr.rel (0) target = $region5
    $region4: #{tpu_custom_call.1} parent=1 // pred_region
      %14 = vsyncadd [#allocation3], 0
      %s15 = sshll.u32 %s0, 4
      %s16 = int_to_ptr.hbm [resolvable:$true] %s15
      %s17 = sshll.u32 [#allocation2], 4
      %s18 = int_to_ptr.vmem [resolvable:$true] %s17
      %23 = dma.hbm_to_vmem [thread:$0]  %s16, 256, %s18, [#allocation3], 128, 128, 8
    $region5: #{tpu_custom_call.1} parent=1 // pred_fallthru
      _
    // Predicated region
    $region6: #{tpu_custom_call.1} parent=1 // pred_check
      _
    $region7: #{tpu_custom_call.1} parent=1 // pred_check_branch
      %25 = sbr.rel (0) target = $region9
    $region8: #{tpu_custom_call.1} parent=1 // pred_region
      %27 = vsyncadd [#allocation6], 0
      %s28 = sshll.u32 %s1, 4
      %s29 = int_to_ptr.hbm [resolvable:$true] %s28
      %s30 = sshll.u32 [#allocation5], 4
      %s31 = int_to_ptr.vmem [resolvable:$true] %s30
      %36 = dma.hbm_to_vmem [thread:$0]  %s29, 1792, %s31, [#allocation6], 64, 64, 4
    $region9: #{tpu_custom_call.1} parent=1 // pred_fallthru
      _
    // Predicated region
    $region10: #{tpu_custom_call.1} parent=1 // pred_check
      _
    $region11: #{tpu_custom_call.1} parent=1 // pred_check_branch
      %38 = sbr.rel (0) target = $region13
    $region12: #{tpu_custom_call.1} parent=1 // pred_region
      %40 = vsyncadd [#allocation6], 0
      %s41 = sshll.u32 %s2, 4
      %s42 = int_to_ptr.hbm [resolvable:$true] %s41
      %s43 = sshll.u32 [#allocation7], 4
      %s44 = int_to_ptr.vmem [resolvable:$true] %s43
      %49 = dma.hbm_to_vmem [thread:$0]  %s42, 512, %s44, [#allocation6], 128, 128, 8
    $region13: #{tpu_custom_call.1} parent=1 // pred_fallthru
      _
    // Predicated region
    $region14: #{tpu_custom_call.1} parent=1 // pred_check
      _
    $region15: #{tpu_custom_call.1} parent=1 // pred_check_branch
      %51 = sbr.rel (0) target = $region17
    $region16: #{tpu_custom_call.1} parent=1 // pred_region
      %53 = dma.done [#allocation3], 256
    $region17: #{tpu_custom_call.1} parent=1 // pred_fallthru
      _
    // Predicated region
    $region18: #{tpu_custom_call.1} parent=1 // pred_check
      _
    $region19: #{tpu_custom_call.1} parent=1 // pred_check_branch
      %55 = sbr.rel (0) target = $region21
    $region20: #{tpu_custom_call.1} parent=1 // pred_region
      %57 = dma.done [#allocation6], 1792
    $region21: #{tpu_custom_call.1} parent=1 // pred_fallthru
      _
    // Predicated region
    $region22: #{tpu_custom_call.1} parent=1 // pred_check
      _
    $region23: #{tpu_custom_call.1} parent=1 // pred_check_branch
      %59 = sbr.rel (0) target = $region25
    $region24: #{tpu_custom_call.1} parent=1 // pred_region
      %61 = dma.done [#allocation6], 512
    $region25: #{tpu_custom_call.1} parent=1 // pred_fallthru
      _
    %v63 = vld [vmem:[#allocation5] sm:$0xf]
    %v64 = vld [vmem:[#allocation5 + $0x4] sm:$0xf]
    %v65 = vld [vmem:[#allocation5 + $0x8] sm:$0xf]
    %v66 = vld [vmem:[#allocation5 + $0xc] sm:$0xf]
    %v67 = vld [vmem:[#allocation5 + $0x20] sm:$0xf]
    %v68 = vld [vmem:[#allocation5 + $0x24] sm:$0xf]
    %v69 = vld [vmem:[#allocation5 + $0x28] sm:$0xf]
    %v70 = vld [vmem:[#allocation5 + $0x2c] sm:$0xf]
    %v71 = vld [vmem:[#allocation5 + $0x30] sm:$0xf]
    %v72 = vld [vmem:[#allocation5 + $0x34] sm:$0xf]
    %v73 = vld [vmem:[#allocation5 + $0x38] sm:$0xf]
    %v74 = vld [vmem:[#allocation5 + $0x3c] sm:$0xf]
    %v75 = vld [vmem:[#allocation5 + $0x40] sm:$0xf]
    %v76 = vld [vmem:[#allocation5 + $0x44] sm:$0xf]
    %v77 = vld [vmem:[#allocation5 + $0x48] sm:$0xf]
    %v78 = vld [vmem:[#allocation5 + $0x4c] sm:$0xf]
    %v79 = vld [vmem:[#allocation5 + $0x50] sm:$0xf]
    %v80 = vld [vmem:[#allocation5 + $0x54] sm:$0xf]
    %v81 = vld [vmem:[#allocation5 + $0x58] sm:$0xf]
    %v82 = vld [vmem:[#allocation5 + $0x5c] sm:$0xf]
    %v83 = vld [vmem:[#allocation5 + $0x60] sm:$0xf]
    %v84 = vld [vmem:[#allocation5 + $0x64] sm:$0xf]
    %v85 = vld [vmem:[#allocation5 + $0x68] sm:$0xf]
    %v86 = vld [vmem:[#allocation5 + $0x6c] sm:$0xf]
    %v87 = vld [vmem:[#allocation7] sm:$0x1]
    %v88 = vld [vmem:[#allocation7 + $0x1] sm:$0x1]
    %v89 = vld [vmem:[#allocation7 + $0x2] sm:$0x1]
    %v90 = vld [vmem:[#allocation7 + $0x3] sm:$0x1]
    %v91 = vld [vmem:[#allocation7 + $0x4] sm:$0x1]
    %v92 = vld [vmem:[#allocation7 + $0x5] sm:$0x1]
    %v93 = vld [vmem:[#allocation7 + $0x6] sm:$0x1]
    %v94 = vld [vmem:[#allocation7 + $0x7] sm:$0x1]
    %v95 = vld [vmem:[#allocation7 + $0x8] sm:$0x1]
    %v96 = vld [vmem:[#allocation7 + $0x9] sm:$0x1]
    %v97 = vld [vmem:[#allocation7 + $0x10] sm:$0xff]
    %v98 = vld [vmem:[#allocation7 + $0x18] sm:$0xff]
    %v99 = vld [vmem:[#allocation2] sm:$0xff]
    %v100 = vld [vmem:[#allocation2 + $0x8] sm:$0xff]
    %v101 = vpack.c.bf16 %v100, %v99
    %v102 = vperm.slane %v87, 0
    %v107 = vunpack.c.l.b16 %v63
    %v108 = vunpack.c.l.b16 %v64
    %v109 = vunpack.c.l.b16 %v65
    %v110 = vunpack.c.l.b16 %v66
    %v111 = vpack.c.b16 %v108, %v107
    %v112 = vpack.c.b16 %v110, %v109
    %vm115 = vcmask 261120
    %v117 = vsel %vm115, %v101, 0
    %119 = vmatpush.bf16.msra.mxu0 0
    %120 = vmatpush.bf16.msra.mxu0 0
    %121 = vmatpush.bf16.msra.mxu0 0
    %122 = vmatpush.bf16.msra.mxu0 0
    %123 = vmatpush.bf16.msra.mxu0 0
    %124 = vmatpush.bf16.msra.mxu0 0
    %125 = vmatpush.bf16.msra.mxu0 %v112
    %126 = vmatpush.bf16.msra.mxu0 %v111
    %127 = vmatmul.bf16.gmra.mxu0 %v117
    %v128 = vpop.f32.mrf.mxu0
    %v129 = vadd.f32 %v102, %v128
    %v130 = vpop.f32.mrf.mxu0
    %v131 = vadd.f32 %v102, %v130
    %132 = vdwg.mxu0
    %v133 = vpack.c.bf16 %v129, %v129
    %v134 = vpack.c.bf16 %v131, %v131
    %v137 = vunpack.c.l.b16 %v133
    %v138 = vunpack.c.l.b16 %v134
    %v139 = vpack.c.b16 %v138, %v137
    %140 = vrot.lane.b32.xlu0 %v139, 96
    %v141 = vpop.permute.xlu0 %140
    %vm142 = vcmask 64512
    %v144 = vsel %vm142, %v139, 0
    %v147 = vsel %vm142, %v141, 0
    %149 = vmatpush.bf16.xpose.msra.mxu0 0
    %150 = vmatpush.bf16.xpose.msra.mxu0 0
    %151 = vmatpush.bf16.xpose.msra.mxu0 0
    %152 = vmatpush.bf16.xpose.msra.mxu0 0
    %153 = vmatpush.bf16.xpose.msra.mxu0 0
    %154 = vmatpush.bf16.xpose.msra.mxu0 0
    %155 = vmatpush.bf16.xpose.msra.mxu0 0
    %156 = vmatpush.bf16.xpose.msra.mxu0 %v147
    %157 = vmatmul.bf16.gmra.mxu0 %v144
    %v158 = vpop.f32.mrf.mxu0
    %v159 = vadd.f32 %v97, %v158
    %v160 = vpop.f32.mrf.mxu0
    %v161 = vadd.f32 %v98, %v160
    %162 = vdwg.mxu0
    %vm163 = vcmask 130048
    %v164 = vsel %vm163, %v159, -inf
    %165 = vmax.xlane.f32.xlu0 %v164
    %v166 = vpop.xlane.xlu0 %165
    %v167 = vsel %vm163, %v161, -inf
    %168 = vmax.xlane.f32.xlu0 %v167
    %v169 = vpop.xlane.xlu0 %168
    %v170 = vsub.f32 %v159, %v166
    %v171 = vsub.f32 %v161, %v169
    %v172 = vmul.f32 %v170, 1.442695
    %v173 = vpow.pop %v172
    %v174 = vmul.f32 %v171, 1.442695
    %v175 = vpow.pop %v174
    %v176 = vsel %vm163, %v173, 0.0
    %177 = vadd.xlane.f32.xlu0 %v176
    %v178 = vpop.xlane.xlu0 %177
    %v179 = vsel %vm163, %v175, 0.0
    %180 = vadd.xlane.f32.xlu0 %v179
    %v181 = vpop.xlane.xlu0 %180
    %v182 = vrcp.pop %v178
    %v183 = vrcp.pop %v181
    %v184 = vmul.f32 %v173, %v182
    %v185 = vmul.f32 %v175, %v183
    %v186 = vpack.c.bf16 %v185, %v184
    %187 = vrot.lane.b32.xlu0 %v139, 64
    %v188 = vpop.permute.xlu0 %187
    %v191 = vsel %vm163, %v186, 0
    %193 = vmatpush.bf16.msra.mxu0 0
    %194 = vmatpush.bf16.msra.mxu0 0
    %195 = vmatpush.bf16.msra.mxu0 0
    %196 = vmatpush.bf16.msra.mxu0 0
    %197 = vmatpush.bf16.msra.mxu0 0
    %198 = vmatpush.bf16.msra.mxu0 0
    %199 = vmatpush.bf16.msra.mxu0 0
    %200 = vmatpush.bf16.msra.mxu0 %v188
    %201 = vmatmul.bf16.gmra.mxu0 %v191
    %v202 = vpop.f32.mrf.mxu0
    %v203 = vadd.f32 0.0, %v202
    %v204 = vpop.f32.mrf.mxu0
    %v205 = vadd.f32 0.0, %v204
    %206 = vdwg.mxu0
    %v207 = vld [vmem:[#allocation5 + $0x10] sm:$0xf]
    %v208 = vpack.c.bf16 %v205, %v203
    %209 = vrot.lane.b32.xlu0 %v139, 120
    %v210 = vpop.permute.xlu0 %209
    %211 = vrot.lane.b32.xlu0 %v139, 88
    %v212 = vpop.permute.xlu0 %211
    %v214 = vsel %vm142, %v210, 0
    %v217 = vsel %vm142, %v212, 0
    %219 = vmatpush.bf16.xpose.msra.mxu0 0
    %220 = vmatpush.bf16.xpose.msra.mxu0 0
    %221 = vmatpush.bf16.xpose.msra.mxu0 0
    %222 = vmatpush.bf16.xpose.msra.mxu0 0
    %223 = vmatpush.bf16.xpose.msra.mxu0 0
    %224 = vmatpush.bf16.xpose.msra.mxu0 0
    %225 = vmatpush.bf16.xpose.msra.mxu0 0
    %226 = vmatpush.bf16.xpose.msra.mxu0 %v217
    %227 = vmatmul.bf16.gmra.mxu0 %v214
    %v228 = vpop.f32.mrf.mxu0
    %v229 = vadd.f32 %v97, %v228
    %v230 = vpop.f32.mrf.mxu0
    %v231 = vadd.f32 %v98, %v230
    %232 = vdwg.mxu0
    %v233 = vsel %vm163, %v229, -inf
    %234 = vmax.xlane.f32.xlu0 %v233
    %v235 = vpop.xlane.xlu0 %234
    %v236 = vsel %vm163, %v231, -inf
    %237 = vmax.xlane.f32.xlu0 %v236
    %v238 = vpop.xlane.xlu0 %237
    %v239 = vsub.f32 %v229, %v235
    %v240 = vsub.f32 %v231, %v238
    %v241 = vmul.f32 %v239, 1.442695
    %v242 = vpow.pop %v241
    %v243 = vmul.f32 %v240, 1.442695
    %v244 = vpow.pop %v243
    %v245 = vsel %vm163, %v242, 0.0
    %246 = vadd.xlane.f32.xlu0 %v245
    %v247 = vpop.xlane.xlu0 %246
    %v248 = vsel %vm163, %v244, 0.0
    %249 = vadd.xlane.f32.xlu0 %v248
    %v250 = vpop.xlane.xlu0 %249
    %v251 = vrcp.pop %v247
    %v252 = vrcp.pop %v250
    %v253 = vmul.f32 %v242, %v251
    %v254 = vmul.f32 %v244, %v252
    %v255 = vpack.c.bf16 %v254, %v253
    %256 = vrot.lane.b32.xlu0 %v139, 56
    %v257 = vpop.permute.xlu0 %256
    %v260 = vsel %vm163, %v255, 0
    %262 = vmatpush.bf16.msra.mxu0 0
    %263 = vmatpush.bf16.msra.mxu0 0
    %264 = vmatpush.bf16.msra.mxu0 0
    %265 = vmatpush.bf16.msra.mxu0 0
    %266 = vmatpush.bf16.msra.mxu0 0
    %267 = vmatpush.bf16.msra.mxu0 0
    %268 = vmatpush.bf16.msra.mxu0 0
    %269 = vmatpush.bf16.msra.mxu0 %v257
    %270 = vmatmul.bf16.gmra.mxu0 %v260
    %v271 = vpop.f32.mrf.mxu0
    %v272 = vadd.f32 0.0, %v271
    %v273 = vpop.f32.mrf.mxu0
    %v274 = vadd.f32 0.0, %v273
    %275 = vdwg.mxu0
    %v276 = vld [vmem:[#allocation5 + $0x14] sm:$0xf]
    %v277 = vpack.c.bf16 %v274, %v272
    %v279 = vsel %vm142, %v277, 0
    %vm281 = vcmask 1043456
    %v283 = vsel %vm281, %v276, 0
    %285 = vmatpush.bf16.msra.mxu0 0
    %286 = vmatpush.bf16.msra.mxu0 0
    %287 = vmatpush.bf16.msra.mxu0 0
    %288 = vmatpush.bf16.msra.mxu0 0
    %289 = vmatpush.bf16.msra.mxu0 0
    %290 = vmatpush.bf16.msra.mxu0 0
    %291 = vmatpush.bf16.msra.mxu0 0
    %292 = vmatpush.bf16.msra.mxu0 %v283
    %293 = vmatmul.bf16.gmra.mxu0 %v279
    %v294 = vpop.f32.mrf.mxu0
    %v295 = vadd.f32 0.0, %v294
    %v296 = vpop.f32.mrf.mxu0
    %v297 = vadd.f32 0.0, %v296
    %298 = vdwg.mxu0
    %v300 = vsel %vm142, %v208, 0
    %v303 = vsel %vm281, %v207, 0
    %305 = vmatpush.bf16.msra.mxu0 0
    %306 = vmatpush.bf16.msra.mxu0 0
    %307 = vmatpush.bf16.msra.mxu0 0
    %308 = vmatpush.bf16.msra.mxu0 0
    %309 = vmatpush.bf16.msra.mxu0 0
    %310 = vmatpush.bf16.msra.mxu0 0
    %311 = vmatpush.bf16.msra.mxu0 0
    %312 = vmatpush.bf16.msra.mxu0 %v303
    %313 = vmatmul.bf16.gmra.mxu0 %v300
    %v314 = vpop.f32.mrf.mxu0
    %v315 = vadd.f32 %v295, %v314
    %v316 = vpop.f32.mrf.mxu0
    %v317 = vadd.f32 %v297, %v316
    %318 = vdwg.mxu0
    %319 = vrot.lane.b32.xlu0 %v139, 112
    %v320 = vpop.permute.xlu0 %319
    %321 = vrot.lane.b32.xlu0 %v139, 80
    %v322 = vpop.permute.xlu0 %321
    %v324 = vsel %vm142, %v320, 0
    %v327 = vsel %vm142, %v322, 0
    %329 = vmatpush.bf16.xpose.msra.mxu0 0
    %330 = vmatpush.bf16.xpose.msra.mxu0 0
    %331 = vmatpush.bf16.xpose.msra.mxu0 0
    %332 = vmatpush.bf16.xpose.msra.mxu0 0
    %333 = vmatpush.bf16.xpose.msra.mxu0 0
    %334 = vmatpush.bf16.xpose.msra.mxu0 0
    %335 = vmatpush.bf16.xpose.msra.mxu0 0
    %336 = vmatpush.bf16.xpose.msra.mxu0 %v327
    %337 = vmatmul.bf16.gmra.mxu0 %v324
    %v338 = vpop.f32.mrf.mxu0
    %v339 = vadd.f32 %v97, %v338
    %v340 = vpop.f32.mrf.mxu0
    %v341 = vadd.f32 %v98, %v340
    %342 = vdwg.mxu0
    %v343 = vsel %vm163, %v339, -inf
    %344 = vmax.xlane.f32.xlu0 %v343
    %v345 = vpop.xlane.xlu0 %344
    %v346 = vsel %vm163, %v341, -inf
    %347 = vmax.xlane.f32.xlu0 %v346
    %v348 = vpop.xlane.xlu0 %347
    %v349 = vsub.f32 %v339, %v345
    %v350 = vsub.f32 %v341, %v348
    %v351 = vmul.f32 %v349, 1.442695
    %v352 = vpow.pop %v351
    %v353 = vmul.f32 %v350, 1.442695
    %v354 = vpow.pop %v353
    %v355 = vsel %vm163, %v352, 0.0
    %356 = vadd.xlane.f32.xlu0 %v355
    %v357 = vpop.xlane.xlu0 %356
    %v358 = vsel %vm163, %v354, 0.0
    %359 = vadd.xlane.f32.xlu0 %v358
    %v360 = vpop.xlane.xlu0 %359
    %v361 = vrcp.pop %v357
    %v362 = vrcp.pop %v360
    %v363 = vmul.f32 %v352, %v361
    %v364 = vmul.f32 %v354, %v362
    %v365 = vpack.c.bf16 %v364, %v363
    %366 = vrot.lane.b32.xlu0 %v139, 48
    %v367 = vpop.permute.xlu0 %366
    %v370 = vsel %vm163, %v365, 0
    %372 = vmatpush.bf16.msra.mxu0 0
    %373 = vmatpush.bf16.msra.mxu0 0
    %374 = vmatpush.bf16.msra.mxu0 0
    %375 = vmatpush.bf16.msra.mxu0 0
    %376 = vmatpush.bf16.msra.mxu0 0
    %377 = vmatpush.bf16.msra.mxu0 0
    %378 = vmatpush.bf16.msra.mxu0 0
    %379 = vmatpush.bf16.msra.mxu0 %v367
    %380 = vmatmul.bf16.gmra.mxu0 %v370
    %v381 = vpop.f32.mrf.mxu0
    %v382 = vadd.f32 0.0, %v381
    %v383 = vpop.f32.mrf.mxu0
    %v384 = vadd.f32 0.0, %v383
    %385 = vdwg.mxu0
    %v386 = vld [vmem:[#allocation5 + $0x18] sm:$0xf]
    %v387 = vpack.c.bf16 %v384, %v382
    %v389 = vsel %vm142, %v387, 0
    %v392 = vsel %vm281, %v386, 0
    %394 = vmatpush.bf16.msra.mxu0 0
    %395 = vmatpush.bf16.msra.mxu0 0
    %396 = vmatpush.bf16.msra.mxu0 0
    %397 = vmatpush.bf16.msra.mxu0 0
    %398 = vmatpush.bf16.msra.mxu0 0
    %399 = vmatpush.bf16.msra.mxu0 0
    %400 = vmatpush.bf16.msra.mxu0 0
    %401 = vmatpush.bf16.msra.mxu0 %v392
    %402 = vmatmul.bf16.gmra.mxu0 %v389
    %v403 = vpop.f32.mrf.mxu0
    %v404 = vadd.f32 0.0, %v403
    %v405 = vpop.f32.mrf.mxu0
    %v406 = vadd.f32 0.0, %v405
    %407 = vdwg.mxu0
    %v408 = vadd.f32 %v315, %v404
    %v409 = vadd.f32 %v317, %v406
    %410 = vrot.lane.b32.xlu0 %v139, 104
    %v411 = vpop.permute.xlu0 %410
    %412 = vrot.lane.b32.xlu0 %v139, 72
    %v413 = vpop.permute.xlu0 %412
    %v415 = vsel %vm142, %v411, 0
    %v418 = vsel %vm142, %v413, 0
    %420 = vmatpush.bf16.xpose.msra.mxu0 0
    %421 = vmatpush.bf16.xpose.msra.mxu0 0
    %422 = vmatpush.bf16.xpose.msra.mxu0 0
    %423 = vmatpush.bf16.xpose.msra.mxu0 0
    %424 = vmatpush.bf16.xpose.msra.mxu0 0
    %425 = vmatpush.bf16.xpose.msra.mxu0 0
    %426 = vmatpush.bf16.xpose.msra.mxu0 0
    %427 = vmatpush.bf16.xpose.msra.mxu0 %v418
    %428 = vmatmul.bf16.gmra.mxu0 %v415
    %v429 = vpop.f32.mrf.mxu0
    %v430 = vadd.f32 %v97, %v429
    %v431 = vpop.f32.mrf.mxu0
    %v432 = vadd.f32 %v98, %v431
    %433 = vdwg.mxu0
    %v434 = vsel %vm163, %v430, -inf
    %435 = vmax.xlane.f32.xlu0 %v434
    %v436 = vpop.xlane.xlu0 %435
    %v437 = vsel %vm163, %v432, -inf
    %438 = vmax.xlane.f32.xlu0 %v437
    %v439 = vpop.xlane.xlu0 %438
    %v440 = vsub.f32 %v430, %v436
    %v441 = vsub.f32 %v432, %v439
    %v442 = vmul.f32 %v440, 1.442695
    %v443 = vpow.pop %v442
    %v444 = vmul.f32 %v441, 1.442695
    %v445 = vpow.pop %v444
    %v446 = vsel %vm163, %v443, 0.0
    %447 = vadd.xlane.f32.xlu0 %v446
    %v448 = vpop.xlane.xlu0 %447
    %v449 = vsel %vm163, %v445, 0.0
    %450 = vadd.xlane.f32.xlu0 %v449
    %v451 = vpop.xlane.xlu0 %450
    %v452 = vrcp.pop %v448
    %v453 = vrcp.pop %v451
    %v454 = vmul.f32 %v443, %v452
    %v455 = vmul.f32 %v445, %v453
    %v456 = vpack.c.bf16 %v455, %v454
    %457 = vrot.lane.b32.xlu0 %v139, 40
    %v458 = vpop.permute.xlu0 %457
    %v461 = vsel %vm163, %v456, 0
    %463 = vmatpush.bf16.msra.mxu0 0
    %464 = vmatpush.bf16.msra.mxu0 0
    %465 = vmatpush.bf16.msra.mxu0 0
    %466 = vmatpush.bf16.msra.mxu0 0
    %467 = vmatpush.bf16.msra.mxu0 0
    %468 = vmatpush.bf16.msra.mxu0 0
    %469 = vmatpush.bf16.msra.mxu0 0
    %470 = vmatpush.bf16.msra.mxu0 %v458
    %471 = vmatmul.bf16.gmra.mxu0 %v461
    %v472 = vpop.f32.mrf.mxu0
    %v473 = vadd.f32 0.0, %v472
    %v474 = vpop.f32.mrf.mxu0
    %v475 = vadd.f32 0.0, %v474
    %476 = vdwg.mxu0
    %v477 = vld [vmem:[#allocation5 + $0x1c] sm:$0xf]
    %v478 = vpack.c.bf16 %v475, %v473
    %v480 = vsel %vm142, %v478, 0
    %v483 = vsel %vm281, %v477, 0
    %485 = vmatpush.bf16.msra.mxu0 0
    %486 = vmatpush.bf16.msra.mxu0 0
    %487 = vmatpush.bf16.msra.mxu0 0
    %488 = vmatpush.bf16.msra.mxu0 0
    %489 = vmatpush.bf16.msra.mxu0 0
    %490 = vmatpush.bf16.msra.mxu0 0
    %491 = vmatpush.bf16.msra.mxu0 0
    %492 = vmatpush.bf16.msra.mxu0 %v483
    %493 = vmatmul.bf16.gmra.mxu0 %v480
    %v494 = vpop.f32.mrf.mxu0
    %v495 = vadd.f32 0.0, %v494
    %v496 = vpop.f32.mrf.mxu0
    %v497 = vadd.f32 0.0, %v496
    %498 = vdwg.mxu0
    %v499 = vadd.f32 %v408, %v495
    %v500 = vadd.f32 %v409, %v497
    %v501 = vperm.slane %v88, 0
    %v502 = vadd.f32 %v499, %v501
    %v503 = vadd.f32 %v500, %v501
    %v504 = vadd.f32 %v99, %v502
    %v505 = vadd.f32 %v100, %v503
    %v506 = vsel %vm115, %v504, 0.0
    %507 = vadd.xlane.f32.xlu0 %v506
    %v508 = vpop.xlane.xlu0 %507
    %v509 = vsel %vm115, %v505, 0.0
    %510 = vadd.xlane.f32.xlu0 %v509
    %v511 = vpop.xlane.xlu0 %510
    %v512 = vrcp.pop 32.0
    %v513 = vmul.f32 32.0, %v512
    %v514 = vsub.f32 1.0, %v513
    %v515 = vmul.f32 %v512, %v514
    %v516 = vadd.f32 %v512, %v515
    %vm517 = vweird.f32 %v512
    %v518 = vsel %vm517, %v512, %v516
    %v519 = vmul.f32 %v508, %v518
    %v520 = vmul.f32 %v511, %v518
    %v521 = vmul.f32 %v504, %v504
    %v522 = vmul.f32 %v505, %v505
    %v523 = vsel %vm115, %v521, 0.0
    %524 = vadd.xlane.f32.xlu0 %v523
    %v525 = vpop.xlane.xlu0 %524
    %v526 = vsel %vm115, %v522, 0.0
    %527 = vadd.xlane.f32.xlu0 %v526
    %v528 = vpop.xlane.xlu0 %527
    %v529 = vmul.f32 %v525, %v518
    %v530 = vmul.f32 %v528, %v518
    %v531 = vmul.f32 %v519, %v519
    %v532 = vmul.f32 %v520, %v520
    %v533 = vsub.f32 %v529, %v531
    %v534 = vsub.f32 %v530, %v532
    %v535 = vsub.f32 %v504, %v519
    %v536 = vsub.f32 %v505, %v520
    %v537 = vadd.f32 %v533, 1e-05
    %v538 = vadd.f32 %v534, 1e-05
    %v539 = vrsqrt.pop %v537
    %v540 = vmul.f32 %v539, %v537
    %v541 = vmul.f32 %v540, %v539
    %v542 = vmul.f32 0.5, %v541
    %v543 = vsub.f32 1.5, %v542
    %v544 = vmul.f32 %v539, %v543
    %vm545 = vweird.f32 %v537
    %vm546 = vweird.f32 %v539
    %vm547 = vmor %vm545, %vm546
    %v548 = vsel %vm547, %v539, %v544
    %v549 = vrsqrt.pop %v538
    %v550 = vmul.f32 %v549, %v538
    %v551 = vmul.f32 %v550, %v549
    %v552 = vmul.f32 0.5, %v551
    %v553 = vsub.f32 1.5, %v552
    %v554 = vmul.f32 %v549, %v553
    %vm555 = vweird.f32 %v538
    %vm556 = vweird.f32 %v549
    %vm557 = vmor %vm555, %vm556
    %v558 = vsel %vm557, %v549, %v554
    %v559 = vmul.f32 %v535, %v548
    %v560 = vmul.f32 %v536, %v558
    %v561 = vperm.slane %v89, 0
    %v562 = vmul.f32 %v559, %v561
    %v563 = vmul.f32 %v560, %v561
    %v564 = vperm.slane %v90, 0
    %v565 = vadd.f32 %v562, %v564
    %v566 = vadd.f32 %v563, %v564
    %v567 = vpack.c.bf16 %v566, %v565
    %v568 = vperm.slane %v91, 0
    %v573 = vunpack.c.l.b16 %v67
    %v574 = vunpack.c.l.b16 %v68
    %v575 = vunpack.c.l.b16 %v69
    %v576 = vunpack.c.l.b16 %v70
    %v577 = vpack.c.b16 %v574, %v573
    %v578 = vpack.c.b16 %v576, %v575
    %v582 = vsel %vm115, %v567, 0
    %584 = vmatpush.bf16.msra.mxu0 0
    %585 = vmatpush.bf16.msra.mxu0 0
    %586 = vmatpush.bf16.msra.mxu0 0
    %587 = vmatpush.bf16.msra.mxu0 0
    %588 = vmatpush.bf16.msra.mxu0 0
    %589 = vmatpush.bf16.msra.mxu0 0
    %590 = vmatpush.bf16.msra.mxu0 %v578
    %591 = vmatpush.bf16.msra.mxu0 %v577
    %592 = vmatmul.bf16.gmra.mxu0 %v582
    %v593 = vpop.f32.mrf.mxu0
    %v594 = vadd.f32 %v568, %v593
    %v595 = vpop.f32.mrf.mxu0
    %v596 = vadd.f32 %v568, %v595
    %597 = vdwg.mxu0
    %v598 = vmax.f32 %v594, 0.0
    %v599 = vmax.f32 %v596, 0.0
    %v600 = vpack.c.bf16 %v599, %v598
    %v601 = vperm.slane %v92, 0
    %v610 = vunpack.c.l.b16 %v71
    %v611 = vunpack.c.l.b16 %v72
    %v612 = vunpack.c.l.b16 %v73
    %v613 = vunpack.c.l.b16 %v74
    %v614 = vunpack.c.l.b16 %v75
    %v615 = vunpack.c.l.b16 %v76
    %v616 = vunpack.c.l.b16 %v77
    %v617 = vunpack.c.l.b16 %v78
    %v618 = vpack.c.b16 %v611, %v610
    %v619 = vpack.c.b16 %v613, %v612
    %v620 = vpack.c.b16 %v615, %v614
    %v621 = vpack.c.b16 %v617, %v616
    %vm626 = vcmask 523264
    %v628 = vsel %vm626, %v600, 0
    %630 = vmatpush.bf16.msra.mxu0 0
    %631 = vmatpush.bf16.msra.mxu0 0
    %632 = vmatpush.bf16.msra.mxu0 0
    %633 = vmatpush.bf16.msra.mxu0 0
    %634 = vmatpush.bf16.msra.mxu0 %v621
    %635 = vmatpush.bf16.msra.mxu0 %v620
    %636 = vmatpush.bf16.msra.mxu0 %v619
    %637 = vmatpush.bf16.msra.mxu0 %v618
    %638 = vmatmul.bf16.gmra.mxu0 %v628
    %v639 = vpop.f32.mrf.mxu0
    %v640 = vadd.f32 %v601, %v639
    %v641 = vpop.f32.mrf.mxu0
    %v642 = vadd.f32 %v601, %v641
    %643 = vdwg.mxu0
    %v644 = vmax.f32 %v640, 0.0
    %v645 = vmax.f32 %v642, 0.0
    %v646 = vpack.c.bf16 %v645, %v644
    %v647 = vperm.slane %v93, 0
    %v652 = vunpack.c.l.b16 %v79
    %v653 = vunpack.c.l.b16 %v80
    %v654 = vunpack.c.l.b16 %v81
    %v655 = vunpack.c.l.b16 %v82
    %v656 = vpack.c.b16 %v653, %v652
    %v657 = vpack.c.b16 %v655, %v654
    %v661 = vsel %vm115, %v646, 0
    %663 = vmatpush.bf16.msra.mxu0 0
    %664 = vmatpush.bf16.msra.mxu0 0
    %665 = vmatpush.bf16.msra.mxu0 0
    %666 = vmatpush.bf16.msra.mxu0 0
    %667 = vmatpush.bf16.msra.mxu0 0
    %668 = vmatpush.bf16.msra.mxu0 0
    %669 = vmatpush.bf16.msra.mxu0 %v657
    %670 = vmatpush.bf16.msra.mxu0 %v656
    %671 = vmatmul.bf16.gmra.mxu0 %v661
    %v672 = vpop.f32.mrf.mxu0
    %v673 = vadd.f32 %v647, %v672
    %v674 = vpop.f32.mrf.mxu0
    %v675 = vadd.f32 %v647, %v674
    %676 = vdwg.mxu0
    %v677 = vadd.f32 %v565, %v673
    %v678 = vadd.f32 %v566, %v675
    %v679 = vsel %vm115, %v677, 0.0
    %680 = vadd.xlane.f32.xlu0 %v679
    %v681 = vpop.xlane.xlu0 %680
    %v682 = vsel %vm115, %v678, 0.0
    %683 = vadd.xlane.f32.xlu0 %v682
    %v684 = vpop.xlane.xlu0 %683
    %v685 = vmul.f32 %v681, %v518
    %v686 = vmul.f32 %v684, %v518
    %v687 = vmul.f32 %v677, %v677
    %v688 = vmul.f32 %v678, %v678
    %v689 = vsel %vm115, %v687, 0.0
    %690 = vadd.xlane.f32.xlu0 %v689
    %v691 = vpop.xlane.xlu0 %690
    %v692 = vsel %vm115, %v688, 0.0
    %693 = vadd.xlane.f32.xlu0 %v692
    %v694 = vpop.xlane.xlu0 %693
    %v695 = vmul.f32 %v691, %v518
    %v696 = vmul.f32 %v694, %v518
    %v697 = vmul.f32 %v685, %v685
    %v698 = vmul.f32 %v686, %v686
    %v699 = vsub.f32 %v695, %v697
    %v700 = vsub.f32 %v696, %v698
    %v701 = vsub.f32 %v677, %v685
    %v702 = vsub.f32 %v678, %v686
    %v703 = vadd.f32 %v699, 1e-05
    %v704 = vadd.f32 %v700, 1e-05
    %v705 = vrsqrt.pop %v703
    %v706 = vmul.f32 %v705, %v703
    %v707 = vmul.f32 %v706, %v705
    %v708 = vmul.f32 0.5, %v707
    %v709 = vsub.f32 1.5, %v708
    %v710 = vmul.f32 %v705, %v709
    %vm711 = vweird.f32 %v703
    %vm712 = vweird.f32 %v705
    %vm713 = vmor %vm711, %vm712
    %v714 = vsel %vm713, %v705, %v710
    %v715 = vrsqrt.pop %v704
    %v716 = vmul.f32 %v715, %v704
    %v717 = vmul.f32 %v716, %v715
    %v718 = vmul.f32 0.5, %v717
    %v719 = vsub.f32 1.5, %v718
    %v720 = vmul.f32 %v715, %v719
    %vm721 = vweird.f32 %v704
    %vm722 = vweird.f32 %v715
    %vm723 = vmor %vm721, %vm722
    %v724 = vsel %vm723, %v715, %v720
    %v725 = vmul.f32 %v701, %v714
    %v726 = vmul.f32 %v702, %v724
    %v727 = vperm.slane %v94, 0
    %v728 = vmul.f32 %v725, %v727
    %v729 = vmul.f32 %v726, %v727
    %v730 = vperm.slane %v95, 0
    %v731 = vadd.f32 %v728, %v730
    %v732 = vadd.f32 %v729, %v730
    %v733 = vpack.c.bf16 %v732, %v731
    %v738 = vunpack.c.l.b16 %v83
    %v739 = vunpack.c.l.b16 %v84
    %v740 = vunpack.c.l.b16 %v85
    %v741 = vunpack.c.l.b16 %v86
    %v742 = vpack.c.b16 %v739, %v738
    %v743 = vpack.c.b16 %v741, %v740
    %v747 = vsel %vm115, %v733, 0
    %749 = vmatpush.bf16.msra.mxu0 0
    %750 = vmatpush.bf16.msra.mxu0 0
    %751 = vmatpush.bf16.msra.mxu0 0
    %752 = vmatpush.bf16.msra.mxu0 0
    %753 = vmatpush.bf16.msra.mxu0 0
    %754 = vmatpush.bf16.msra.mxu0 0
    %755 = vmatpush.bf16.msra.mxu0 %v743
    %756 = vmatpush.bf16.msra.mxu0 %v742
    %757 = vmatmul.bf16.gmra.mxu0 %v747
    %v758 = vpop.f32.mrf.mxu0
    %v759 = vadd.f32 0.0, %v758
    %v760 = vpop.f32.mrf.mxu0
    %v761 = vadd.f32 0.0, %v760
    %762 = vdwg.mxu0
    %v763 = vsel %vm163, %v759, 0.0
    %v764 = vrot.slane %v763, 4
    %v765 = vadd.f32 %v763, %v764
    %v766 = vrot.slane %v765, 2
    %v767 = vadd.f32 %v765, %v766
    %v768 = vrot.slane %v767, 1
    %v769 = vadd.f32 %v767, %v768
    %v770 = vsel %vm163, %v761, 0.0
    %v771 = vrot.slane %v770, 4
    %v772 = vadd.f32 %v770, %v771
    %v773 = vrot.slane %v772, 2
    %v774 = vadd.f32 %v772, %v773
    %v775 = vrot.slane %v774, 1
    %v776 = vadd.f32 %v774, %v775
    %v777 = vperm.slane %v96, 0
    %v778 = vadd.f32 %v769, %v777
    %v779 = vadd.f32 %v776, %v777
    %v782 = vrot.slane %v779, 7
    %vm783 = vcmask 1041409
    %v784 = vsel %vm783, %v782, %v778
    %vm786 = vcmask 123904
    %787 = vst.msk [vmem:[#allocation8] sm:$0x3] %vm786, %v784
    // Predicated region
    $region26: #{tpu_custom_call.1} parent=1 // pred_check
      _
    $region27: #{tpu_custom_call.1} parent=1 // pred_check_branch
      %789 = sbr.rel (0) target = $region29
    $region28: #{tpu_custom_call.1} parent=1 // pred_region
      %791 = vsyncadd [#allocation4], 0
      %s793 = sshll.u32 [#allocation8], 4
      %s794 = int_to_ptr.vmem [resolvable:$true] %s793
      %s795 = sshll.u32 %s3, 4
      %s796 = int_to_ptr.hbm [resolvable:$true] %s795
      %798 = dma.vmem_to_hbm [thread:$0]  %s794, 32, %s796, [#allocation4]
    $region29: #{tpu_custom_call.1} parent=1 // pred_fallthru
      _
    // Predicated region
    $region30: #{tpu_custom_call.1} parent=1 // pred_check
      _
    $region31: #{tpu_custom_call.1} parent=1 // pred_check_branch
      %800 = sbr.rel (0) target = $region33
    $region32: #{tpu_custom_call.1} parent=1 // pred_region
      %802 = dma.done [#allocation4], 32
    $region33: #{tpu_custom_call.1} parent=1 // pred_fallthru
      _
    %803 = vsyncpa [#allocation3], 1
    %804 = vsyncpa [#allocation6], 1
    %805 = vsyncpa [#allocation4], 1

</llo_original>
